<compile_context>
chip_gen: v6e
topology: v6e:2x2x1
jax: 0.10.0
libtpu: 0.0.40
codegen_flags: <defaults>
</compile_context>

<pallas_src>
import functools

import jax
import jax.numpy as jnp
from jax.experimental import pallas as pl
from jax.experimental.pallas import tpu as pltpu

LANES = 128          # TPU lane width: hidden & action compute dims are padded to this.
NEG_BIG = -1e30      # additive bias on padded logit lanes -> exp() underflows to 0.


def _round_up(n, m):
    return ((n + m - 1) // m) * m


def agent_forward_kernel(x_ref, w1_ref, w2_ref, bias_ref, o_ref, *, a_size):
    """softmax(ReLU(x @ W1 + b1) @ W2 + b2) over one batch block.

    Compute is lane-dense over 128 padded hidden/action lanes (free: the kernel is
    memory/overhead-bound, not VPU/MXU-bound); only the a_size real probability
    lanes are written to HBM.
    """
    x = x_ref[...]                                                # (blk, s_size)
    # fc1 + bias + ReLU. Weights are pre-padded to 128 lanes; padded lanes stay 0.
    h = jnp.dot(x, w1_ref[...], preferred_element_type=jnp.float32)
    h = jnp.maximum(h + bias_ref[0:1, :], 0.0)                    # (blk, 128)
    # fc2 + bias. Padded logit lanes carry -1e30 so softmax ignores them.
    logits = jnp.dot(h, w2_ref[...], preferred_element_type=jnp.float32)
    logits = logits + bias_ref[1:2, :]                            # (blk, 128)
    # Numerically stable softmax over the (padded) action axis.
    m = jnp.max(logits, axis=-1, keepdims=True)
    e = jnp.exp(logits - m)
    denom = jnp.sum(e, axis=-1, keepdims=True)
    # Exact divide (NOT approx reciprocal): rows sum to 1 up to f32 ulp, and the
    # divide is hidden under the HBM-bound pipeline anyway.
    o_ref[...] = (e[:, :a_size] / denom).astype(o_ref.dtype)


def pack_agent_params(w1, b1, w2, b2):
    """Pad parameters to lane-dense shapes once, at setup time.

    w1: (s, h) -> (s, 128), zero-padded columns
    w2: (h, a) -> (128, 128), zero-padded rows/cols
    b1, b2     -> one (2, 128) array; padded logit lanes of row 1 (b2) get NEG_BIG
                  so they vanish under softmax.
    """
    s_size, h_size = w1.shape
    _, a_size = w2.shape
    w1p = jnp.zeros((s_size, LANES), jnp.float32).at[:, :h_size].set(w1)
    w2p = jnp.zeros((LANES, LANES), jnp.float32).at[:h_size, :a_size].set(w2)
    bias = jnp.zeros((2, LANES), jnp.float32)
    bias = bias.at[0, :h_size].set(jnp.reshape(b1, (-1,)))
    bias = bias.at[1, :].set(NEG_BIG)
    bias = bias.at[1, :a_size].set(jnp.reshape(b2, (-1,)))
    return w1p, w2p, bias


def agent_forward(x, w1p, w2p, bias, a_size, block_b=2048):
    """x: (B, s_size) f32; packed params from pack_agent_params -> probs (B, a_size).

    NOTE on usage (perf): batch all CEM population members / env states into ONE call
    with a large B -- many tiny-B calls are dominated by per-call launch + weight DMA.
    """
    B, s_size = x.shape
    # Batch block: multiple of 8 sublanes.  Big default (2048) amortizes ~0.35us/step
    # pipeline overhead; for mid-size batches use ~B/2 so the "parallel" grid has
    # >=2 steps (v7x megacore sharding).
    if B <= 8:
        blk = 8
    else:
        blk = min(block_b, _round_up((B + 1) // 2, 8))
    B_pad = _round_up(B, blk)
    x_in = jnp.pad(x, ((0, B_pad - B), (0, 0))) if B_pad != B else x

    cost = pl.CostEstimate(
        flops=2 * B_pad * (s_size * LANES + LANES * LANES),
        transcendentals=B_pad * LANES,
        bytes_accessed=4 * (x_in.size + w1p.size + w2p.size + bias.size
                            + B_pad * a_size),
    )

    probs_padded = pl.pallas_call(
        functools.partial(agent_forward_kernel, a_size=a_size),
        out_shape=jax.ShapeDtypeStruct((B_pad, a_size), jnp.float32),
        grid=(B_pad // blk,),
        in_specs=[
            pl.BlockSpec((blk, s_size), lambda i: (i, 0)),    # x: batch-blocked
            pl.BlockSpec((s_size, LANES), lambda i: (0, 0)),  # w1p: grid-invariant
            pl.BlockSpec((LANES, LANES), lambda i: (0, 0)),   # w2p: grid-invariant
            pl.BlockSpec((2, LANES), lambda i: (0, 0)),       # packed biases
        ],
        # Only the a_size real probability lanes go back to HBM (contiguous rows,
        # ~64x less writeback than a lane-padded 128-wide f32 slab).
        out_specs=pl.BlockSpec((blk, a_size), lambda i: (i, 0)),
        compiler_params=pltpu.CompilerParams(
            dimension_semantics=("parallel",),
            vmem_limit_bytes=32 * 1024 * 1024,   # room for blk up to ~4096 everywhere
        ),
        cost_estimate=cost,
    )(x_in, w1p, w2p, bias)
    return probs_padded[:B]


# TODO(synk): act()/evaluate()/learn() (env stepping, Categorical sampling, CEM loop)
# are host-side control flow, not kernel work, and are intentionally not translated.

if __name__ == "__main__":
    # Shapes implied by the module (CartPole-like env): s_size=4, h_size=16, a_size=2
    batch, s_size, h_size, a_size = 2, 4, 16, 2

    key = jax.random.PRNGKey(0)
    kx, k1, kb1, k2, kb2 = jax.random.split(key, 5)

    x = jax.random.normal(kx, (batch, s_size), dtype=jnp.float32)
    w1 = jax.random.normal(k1, (s_size, h_size), dtype=jnp.float32) * 0.1
    b1 = jax.random.normal(kb1, (h_size,), dtype=jnp.float32) * 0.1
    w2 = jax.random.normal(k2, (h_size, a_size), dtype=jnp.float32) * 0.1
    b2 = jax.random.normal(kb2, (a_size,), dtype=jnp.float32) * 0.1

    w1p, w2p, bias = pack_agent_params(w1, b1, w2, b2)

    def ref(xv):
        h_ref = jnp.maximum(xv @ w1 + b1[None, :], 0.0)
        return jax.nn.softmax(h_ref @ w2 + b2[None, :], axis=-1)

    # Small batch (single grid step).
    probs = agent_forward(x, w1p, w2p, bias, a_size)
    jax.block_until_ready(probs)
    assert probs.shape == (batch, a_size)
    assert jnp.allclose(probs, ref(x), atol=2e-3, rtol=2e-3)
    # Exact divide -> each row sums to 1 up to f32 rounding.
    assert jnp.allclose(jnp.sum(probs, axis=-1), 1.0, atol=1e-3)

    # Larger batch with a small block to exercise a multi-step grid and the
    # batch-padding path.
    big_b = 300
    x_big = jax.random.normal(jax.random.PRNGKey(1), (big_b, s_size), jnp.float32)
    probs_big = agent_forward(x_big, w1p, w2p, bias, a_size, block_b=128)
    jax.block_until_ready(probs_big)
    assert probs_big.shape == (big_b, a_size)
    assert jnp.allclose(probs_big, ref(x_big), atol=2e-3, rtol=2e-3)
    assert jnp.allclose(jnp.sum(probs_big, axis=-1), 1.0, atol=1e-3)

    # Default (large-block) path on the same larger batch: ~B/2 block -> 2 grid steps.
    probs_big2 = agent_forward(x_big, w1p, w2p, bias, a_size)
    jax.block_until_ready(probs_big2)
    assert probs_big2.shape == (big_b, a_size)
    assert jnp.allclose(probs_big2, ref(x_big), atol=2e-3, rtol=2e-3)
    assert jnp.allclose(jnp.sum(probs_big2, axis=-1), 1.0, atol=1e-3)

    print("KERNEL_OK")
</pallas_src>

<mosaic_0001>
module attributes {stable_mosaic.version = 11 : i64} {
  func.func @agent_forward_kernel(%arg0: i32, %arg1: memref<8x4xf32, #tpu.memory_space<vmem>>, %arg2: memref<4x128xf32, #tpu.memory_space<vmem>>, %arg3: memref<128x128xf32, #tpu.memory_space<vmem>>, %arg4: memref<2x128xf32, #tpu.memory_space<vmem>>, %arg5: memref<8x2xf32, #tpu.memory_space<vmem>>) attributes {dimension_semantics = [#tpu.dimension_semantics<parallel>], iteration_bounds = array<i64: 1>, scalar_prefetch = 0 : i64, scratch_operands = 0 : i64, tpu.core_type = #tpu.core_type<tc>, window_params = [{transform_indices = @transform_0, window_bounds = array<i64: 8, 4>}, {pipeline_mode = #tpu.pipeline_mode<synchronous>, transform_indices = @transform_1, window_bounds = array<i64: 4, 128>}, {pipeline_mode = #tpu.pipeline_mode<synchronous>, transform_indices = @transform_2, window_bounds = array<i64: 128, 128>}, {pipeline_mode = #tpu.pipeline_mode<synchronous>, transform_indices = @transform_3, window_bounds = array<i64: 2, 128>}, {transform_indices = @transform_4, window_bounds = array<i64: 8, 2>}]} {
    %c0 = arith.constant 0 : index
    %c0_0 = arith.constant 0 : index
    %0 = vector.load %arg1[%c0, %c0_0] : memref<8x4xf32, #tpu.memory_space<vmem>>, vector<8x4xf32>
    %c0_1 = arith.constant 0 : index
    %c0_2 = arith.constant 0 : index
    %1 = vector.load %arg2[%c0_1, %c0_2] : memref<4x128xf32, #tpu.memory_space<vmem>>, vector<4x128xf32>
    %cst = arith.constant dense<0.000000e+00> : vector<8x128xf32>
    %2 = tpu.matmul %0, %1, %cst {dimension_numbers = #tpu.dot_dimension_numbers<[1], [0], [0], [1], [0, 0, 1, 1], [], []>} : vector<8x4xf32>, vector<4x128xf32>, vector<8x128xf32> -> vector<8x128xf32>
    %c0_3 = arith.constant 0 : index
    %c0_4 = arith.constant 0 : index
    %3 = vector.load %arg4[%c0_3, %c0_4] : memref<2x128xf32, #tpu.memory_space<vmem>>, vector<1x128xf32>
    %4 = vector.broadcast %3 : vector<1x128xf32> to vector<8x128xf32>
    %5 = arith.addf %2, %4 : vector<8x128xf32>
    %cst_5 = arith.constant 0.000000e+00 : f32
    %6 = vector.broadcast %cst_5 : f32 to vector<8x128xf32>
    %7 = arith.maximumf %5, %6 : vector<8x128xf32>
    %c0_6 = arith.constant 0 : index
    %c0_7 = arith.constant 0 : index
    %8 = vector.load %arg3[%c0_6, %c0_7] : memref<128x128xf32, #tpu.memory_space<vmem>>, vector<128x128xf32>
    %cst_8 = arith.constant dense<0.000000e+00> : vector<8x128xf32>
    %9 = tpu.matmul %7, %8, %cst_8 {dimension_numbers = #tpu.dot_dimension_numbers<[1], [0], [0], [1], [0, 0, 1, 1], [], []>} : vector<8x128xf32>, vector<128x128xf32>, vector<8x128xf32> -> vector<8x128xf32>
    %c1 = arith.constant 1 : index
    %c0_9 = arith.constant 0 : index
    %10 = vector.load %arg4[%c1, %c0_9] : memref<2x128xf32, #tpu.memory_space<vmem>>, vector<1x128xf32>
    %11 = vector.broadcast %10 : vector<1x128xf32> to vector<8x128xf32>
    %12 = arith.addf %9, %11 : vector<8x128xf32>
    %cst_10 = arith.constant dense<0xFF800000> : vector<8xf32>
    %13 = vector.multi_reduction <maximumf>, %12, %cst_10 [1] : vector<8x128xf32> to vector<8xf32>
    %14 = vector.shape_cast %13 : vector<8xf32> to vector<8x1xf32>
    %15 = vector.broadcast %14 : vector<8x1xf32> to vector<8x128xf32>
    %16 = arith.subf %12, %15 : vector<8x128xf32>
    %17 = math.exp %16 : vector<8x128xf32>
    %cst_11 = arith.constant dense<0.000000e+00> : vector<8xf32>
    %18 = vector.multi_reduction <add>, %17, %cst_11 [1] : vector<8x128xf32> to vector<8xf32>
    %19 = vector.shape_cast %18 : vector<8xf32> to vector<8x1xf32>
    %20 = vector.extract_strided_slice %17 {offsets = [0, 0], sizes = [8, 2], strides = [1, 1]} : vector<8x128xf32> to vector<8x2xf32>
    %21 = vector.broadcast %19 : vector<8x1xf32> to vector<8x2xf32>
    %22 = arith.divf %20, %21 : vector<8x2xf32>
    %c0_12 = arith.constant 0 : index
    %c0_13 = arith.constant 0 : index
    %23 = vector.load %arg5[%c0_12, %c0_13] : memref<8x2xf32, #tpu.memory_space<vmem>>, vector<8x2xf32>
    tpu.vector_store %arg5[%c0_12, %c0_13], %22 {strides = array<i32>} : memref<8x2xf32, #tpu.memory_space<vmem>>, vector<8x2xf32>,
    return
  }
  func.func @transform_0(%arg0: i32) -> (i32, i32) {
    %c0_i32 = arith.constant 0 : i32
    %c0_i32_0 = arith.constant 0 : i32
    return %arg0, %c0_i32 : i32, i32
  }
  func.func @transform_1(%arg0: i32) -> (i32, i32) {
    %c0_i32 = arith.constant 0 : i32
    %c0_i32_0 = arith.constant 0 : i32
    %c0_i32_1 = arith.constant 0 : i32
    return %c0_i32, %c0_i32_0 : i32, i32
  }
  func.func @transform_2(%arg0: i32) -> (i32, i32) {
    %c0_i32 = arith.constant 0 : i32
    %c0_i32_0 = arith.constant 0 : i32
    %c0_i32_1 = arith.constant 0 : i32
    return %c0_i32, %c0_i32_0 : i32, i32
  }
  func.func @transform_3(%arg0: i32) -> (i32, i32) {
    %c0_i32 = arith.constant 0 : i32
    %c0_i32_0 = arith.constant 0 : i32
    %c0_i32_1 = arith.constant 0 : i32
    return %c0_i32, %c0_i32_0 : i32, i32
  }
  func.func @transform_4(%arg0: i32) -> (i32, i32) {
    %c0_i32 = arith.constant 0 : i32
    %c0_i32_0 = arith.constant 0 : i32
    return %arg0, %c0_i32 : i32, i32
  }
}

</mosaic_0001>

<llo_original>
// kernel: tpu_custom_call.1
$region0: #{tpu_custom_call.1}
  #allocation0 [shape = 'u32[]', space=smem, size = 0x4, offset = 0x4, fixed_abs, tag = 'smem constant byte address 0x4 - core index']
  #allocation1 [shape = 'u32[144,128]{1,0:T(1,128)}', space=vmem, size = 0x12000, scoped, tag = 'internal scratch']
  %s0 = inlined_call_operand.vmem [shape: f32[8,4], index: 0, kind: input, shape index: {}]
  %s1 = inlined_call_operand.vmem [shape: f32[4,128], index: 1, kind: input, shape index: {}]
  %s2 = inlined_call_operand.hbm [shape: f32[128,128], index: 2, kind: input, shape index: {}]
  %s3 = inlined_call_operand.vmem [shape: f32[2,128], index: 3, kind: input, shape index: {}]
  %s4 = inlined_call_operand.vmem [shape: f32[8,2], index: 4, kind: output, shape index: {}]
  %s5 = sld [smem:[#allocation0]]
  $region30: #{tpu_custom_call.1} parent=0
    _
  %s7 = ssub.s32 1, %s5
  %s8 = scalar_select 0, %s7, %s5
  $region1: #{tpu_custom_call.1} parent=0
    #allocation2 [shape = 'u8[65536]{0}', space=vmem, size = 0x10000, scoped, tag = 'input window, operand 2, single buffered']
    #allocation3 [shape = 's32[1]{0}', space=sflag, size = 0x4, scoped, tag = 'scoped memory for tpu_custom_call.1']
    %9 = vsyncpa [#allocation3], 0
    // Predicated region
    $region2: #{tpu_custom_call.1} parent=1 // pred_check
      _
    $region3: #{tpu_custom_call.1} parent=1 // pred_check_branch
      %11 = sbr.rel (0) target = $region5
    $region4: #{tpu_custom_call.1} parent=1 // pred_region
      _
    $region5: #{tpu_custom_call.1} parent=1 // pred_fallthru
      _
    // Predicated region
    $region6: #{tpu_custom_call.1} parent=1 // pred_check
      _
    $region7: #{tpu_custom_call.1} parent=1 // pred_check_branch
      %13 = sbr.rel (0) target = $region9
    $region8: #{tpu_custom_call.1} parent=1 // pred_region
      _
    $region9: #{tpu_custom_call.1} parent=1 // pred_fallthru
      _
    // Predicated region
    $region10: #{tpu_custom_call.1} parent=1 // pred_check
      _
    $region11: #{tpu_custom_call.1} parent=1 // pred_check_branch
      %15 = sbr.rel (0) target = $region13
    $region12: #{tpu_custom_call.1} parent=1 // pred_region
      %s17 = ssub.s32 2048, 2048
      %18 = vsyncadd [#allocation3], %s17
      %s19 = sshll.u32 [#allocation2], 4
      %s20 = int_to_ptr.vmem [resolvable:$true] %s19
      %25 = dma.hbm_to_vmem [thread:$0]  %s2, 2048, %s20, [#allocation3], 128, 128, 8
    $region13: #{tpu_custom_call.1} parent=1 // pred_fallthru
      _
    // Predicated region
    $region14: #{tpu_custom_call.1} parent=1 // pred_check
      _
    $region15: #{tpu_custom_call.1} parent=1 // pred_check_branch
      %27 = sbr.rel (0) target = $region17
    $region16: #{tpu_custom_call.1} parent=1 // pred_region
      _
    $region17: #{tpu_custom_call.1} parent=1 // pred_fallthru
      _
    // Predicated region
    $region18: #{tpu_custom_call.1} parent=1 // pred_check
      _
    $region19: #{tpu_custom_call.1} parent=1 // pred_check_branch
      %29 = sbr.rel (0) target = $region21
    $region20: #{tpu_custom_call.1} parent=1 // pred_region
      %30 = dma.done [#allocation3], 2048
    $region21: #{tpu_custom_call.1} parent=1 // pred_fallthru
      _
    %v31 = vld [vmem:[%s0] sm:$0xff]
    %v32 = vld [vmem:[%s1] sm:$0xf]
    %v33 = vld [vmem:[%s3] sm:$0x1]
    %v34 = vlaneseq
    %v35 = vshrl.u32 %v34, 7
    %v36 = vsub.s32 0, %v35
    %v37 = vrot.slane %v33, %v36
    %vm38 = vcmask 31744
    %v40 = vsel %vm38, %v31, 0
    %vm42 = vcmask 1043456
    %v44 = vsel %vm42, %v32, 0
    %46 = vmatprep.subr.mxu0 0.0
    %47 = vmatpush1.msra.mxu0 0.0
    %48 = vmatprep.subr.mxu0 0.0
    %49 = vmatpush1.msra.mxu0 0.0
    %50 = vmatprep.subr.mxu0 0.0
    %51 = vmatpush1.msra.mxu0 0.0
    %52 = vmatprep.subr.mxu0 0.0
    %53 = vmatpush1.msra.mxu0 0.0
    %54 = vmatprep.subr.mxu0 0.0
    %55 = vmatpush1.msra.mxu0 0.0
    %56 = vmatprep.subr.mxu0 0.0
    %57 = vmatpush1.msra.mxu0 0.0
    %58 = vmatprep.subr.mxu0 0.0
    %59 = vmatpush1.msra.mxu0 0.0
    %60 = vmatprep.subr.mxu0 0.0
    %61 = vmatpush1.msra.mxu0 0.0
    %62 = vmatprep.subr.mxu0 0.0
    %63 = vmatpush1.msra.mxu0 0.0
    %64 = vmatprep.subr.mxu0 0.0
    %65 = vmatpush1.msra.mxu0 0.0
    %66 = vmatprep.subr.mxu0 0.0
    %67 = vmatpush1.msra.mxu0 0.0
    %68 = vmatprep.subr.mxu0 0.0
    %69 = vmatpush1.msra.mxu0 0.0
    %70 = vmatprep.subr.mxu0 0.0
    %71 = vmatpush1.msra.mxu0 0.0
    %72 = vmatprep.subr.mxu0 0.0
    %73 = vmatpush1.msra.mxu0 0.0
    %74 = vmatprep.subr.mxu0 0.0
    %75 = vmatpush1.msra.mxu0 0.0
    %76 = vmatprep.subr.mxu0 0.0
    %77 = vmatpush1.msra.mxu0 %v44
    %78 = vmatprep.subr.mxu0 0.0
    %79 = vmatpush2.msra.mxu0 0.0
    %80 = vmatprep.subr.mxu0 0.0
    %81 = vmatpush2.msra.mxu0 0.0
    %82 = vmatprep.subr.mxu0 0.0
    %83 = vmatpush2.msra.mxu0 0.0
    %84 = vmatprep.subr.mxu0 0.0
    %85 = vmatpush2.msra.mxu0 0.0
    %86 = vmatprep.subr.mxu0 0.0
    %87 = vmatpush2.msra.mxu0 0.0
    %88 = vmatprep.subr.mxu0 0.0
    %89 = vmatpush2.msra.mxu0 0.0
    %90 = vmatprep.subr.mxu0 0.0
    %91 = vmatpush2.msra.mxu0 0.0
    %92 = vmatprep.subr.mxu0 0.0
    %93 = vmatpush2.msra.mxu0 0.0
    %94 = vmatprep.subr.mxu0 0.0
    %95 = vmatpush2.msra.mxu0 0.0
    %96 = vmatprep.subr.mxu0 0.0
    %97 = vmatpush2.msra.mxu0 0.0
    %98 = vmatprep.subr.mxu0 0.0
    %99 = vmatpush2.msra.mxu0 0.0
    %100 = vmatprep.subr.mxu0 0.0
    %101 = vmatpush2.msra.mxu0 0.0
    %102 = vmatprep.subr.mxu0 0.0
    %103 = vmatpush2.msra.mxu0 0.0
    %104 = vmatprep.subr.mxu0 0.0
    %105 = vmatpush2.msra.mxu0 0.0
    %106 = vmatprep.subr.mxu0 0.0
    %107 = vmatpush2.msra.mxu0 0.0
    %108 = vmatprep.subr.mxu0 0.0
    %109 = vmatpush2.msra.mxu0 0.0
    %110 = vmatprep.mubr.f32.mxu0 0.0
    %111 = vmatmul.mubr.f32.gmra.mxu0 %v40
    %v112 = vpop.f32.mrf.mxu0
    %v113 = vadd.f32 %v37, %v112
    %v114 = vpop.f32.mrf.mxu0
    %115 = vdwg.mxu0
    %v116 = vmax.f32 %v113, 0.0
    %v117 = vld [vmem:[#allocation2] sm:$0xff]
    %v118 = vld [vmem:[#allocation2 + $0x8] sm:$0xff]
    %v119 = vld [vmem:[#allocation2 + $0x10] sm:$0xff]
    %v120 = vld [vmem:[#allocation2 + $0x18] sm:$0xff]
    %v121 = vld [vmem:[#allocation2 + $0x20] sm:$0xff]
    %v122 = vld [vmem:[#allocation2 + $0x28] sm:$0xff]
    %v123 = vld [vmem:[#allocation2 + $0x30] sm:$0xff]
    %v124 = vld [vmem:[#allocation2 + $0x38] sm:$0xff]
    %v125 = vld [vmem:[#allocation2 + $0x40] sm:$0xff]
    %v126 = vld [vmem:[#allocation2 + $0x48] sm:$0xff]
    %v127 = vld [vmem:[#allocation2 + $0x50] sm:$0xff]
    %v128 = vld [vmem:[#allocation2 + $0x58] sm:$0xff]
    %v129 = vld [vmem:[#allocation2 + $0x60] sm:$0xff]
    %v130 = vld [vmem:[#allocation2 + $0x68] sm:$0xff]
    %v131 = vld [vmem:[#allocation2 + $0x70] sm:$0xff]
    %v132 = vld [vmem:[#allocation2 + $0x78] sm:$0xff]
    %v133 = vld [vmem:[%s3 + $0x1] sm:$0x1]
    %v134 = vlaneseq
    %v135 = vshrl.u32 %v134, 7
    %v136 = vsub.s32 0, %v135
    %v137 = vrot.slane %v133, %v136
    %138 = vmatprep.subr.mxu0 0.0
    %139 = vmatpush1.msra.mxu0 %v132
    %140 = vmatprep.subr.mxu0 0.0
    %141 = vmatpush1.msra.mxu0 %v131
    %142 = vmatprep.subr.mxu0 0.0
    %143 = vmatpush1.msra.mxu0 %v130
    %144 = vmatprep.subr.mxu0 0.0
    %145 = vmatpush1.msra.mxu0 %v129
    %146 = vmatprep.subr.mxu0 0.0
    %147 = vmatpush1.msra.mxu0 %v128
    %148 = vmatprep.subr.mxu0 0.0
    %149 = vmatpush1.msra.mxu0 %v127
    %150 = vmatprep.subr.mxu0 0.0
    %151 = vmatpush1.msra.mxu0 %v126
    %152 = vmatprep.subr.mxu0 0.0
    %153 = vmatpush1.msra.mxu0 %v125
    %154 = vmatprep.subr.mxu0 0.0
    %155 = vmatpush1.msra.mxu0 %v124
    %156 = vmatprep.subr.mxu0 0.0
    %157 = vmatpush1.msra.mxu0 %v123
    %158 = vmatprep.subr.mxu0 0.0
    %159 = vmatpush1.msra.mxu0 %v122
    %160 = vmatprep.subr.mxu0 0.0
    %161 = vmatpush1.msra.mxu0 %v121
    %162 = vmatprep.subr.mxu0 0.0
    %163 = vmatpush1.msra.mxu0 %v120
    %164 = vmatprep.subr.mxu0 0.0
    %165 = vmatpush1.msra.mxu0 %v119
    %166 = vmatprep.subr.mxu0 0.0
    %167 = vmatpush1.msra.mxu0 %v118
    %168 = vmatprep.subr.mxu0 0.0
    %169 = vmatpush1.msra.mxu0 %v117
    %170 = vmatprep.subr.mxu0 0.0
    %171 = vmatpush2.msra.mxu0 0.0
    %172 = vmatprep.subr.mxu0 0.0
    %173 = vmatpush2.msra.mxu0 0.0
    %174 = vmatprep.subr.mxu0 0.0
    %175 = vmatpush2.msra.mxu0 0.0
    %176 = vmatprep.subr.mxu0 0.0
    %177 = vmatpush2.msra.mxu0 0.0
    %178 = vmatprep.subr.mxu0 0.0
    %179 = vmatpush2.msra.mxu0 0.0
    %180 = vmatprep.subr.mxu0 0.0
    %181 = vmatpush2.msra.mxu0 0.0
    %182 = vmatprep.subr.mxu0 0.0
    %183 = vmatpush2.msra.mxu0 0.0
    %184 = vmatprep.subr.mxu0 0.0
    %185 = vmatpush2.msra.mxu0 0.0
    %186 = vmatprep.subr.mxu0 0.0
    %187 = vmatpush2.msra.mxu0 0.0
    %188 = vmatprep.subr.mxu0 0.0
    %189 = vmatpush2.msra.mxu0 0.0
    %190 = vmatprep.subr.mxu0 0.0
    %191 = vmatpush2.msra.mxu0 0.0
    %192 = vmatprep.subr.mxu0 0.0
    %193 = vmatpush2.msra.mxu0 0.0
    %194 = vmatprep.subr.mxu0 0.0
    %195 = vmatpush2.msra.mxu0 0.0
    %196 = vmatprep.subr.mxu0 0.0
    %197 = vmatpush2.msra.mxu0 0.0
    %198 = vmatprep.subr.mxu0 0.0
    %199 = vmatpush2.msra.mxu0 0.0
    %200 = vmatprep.subr.mxu0 0.0
    %201 = vmatpush2.msra.mxu0 0.0
    %202 = vmatprep.mubr.f32.mxu0 0.0
    %203 = vmatmul.mubr.f32.gmra.mxu0 %v116
    %v204 = vpop.f32.mrf.mxu0
    %v205 = vadd.f32 %v137, %v204
    %v206 = vpop.f32.mrf.mxu0
    %207 = vdwg.mxu0
    %208 = vmax.xlane.f32.xlu0 %v205
    %v209 = vpop.xlane.xlu0 %208
    %v210 = vsub.f32 %v205, %v209
    %v211 = vmul.f32 %v210, 1.442695
    %v212 = vpow.pop %v211
    %213 = vadd.xlane.f32.xlu0 %v212
    %v214 = vpop.xlane.xlu0 %213
    %v215 = vrcp.pop %v214
    %v216 = vmul.f32 %v212, %v215
    %vm217 = vcmask 15360
    %218 = vst.msk [vmem:[%s4] sm:$0xff] %vm217, %v216
    // Predicated region
    $region22: #{tpu_custom_call.1} parent=1 // pred_check
      _
    $region23: #{tpu_custom_call.1} parent=1 // pred_check_branch
      %220 = sbr.rel (0) target = $region25
    $region24: #{tpu_custom_call.1} parent=1 // pred_region
      _
    $region25: #{tpu_custom_call.1} parent=1 // pred_fallthru
      _
    // Predicated region
    $region26: #{tpu_custom_call.1} parent=1 // pred_check
      _
    $region27: #{tpu_custom_call.1} parent=1 // pred_check_branch
      %222 = sbr.rel (0) target = $region29
    $region28: #{tpu_custom_call.1} parent=1 // pred_region
      _
    $region29: #{tpu_custom_call.1} parent=1 // pred_fallthru
      _
    %223 = vsyncpa [#allocation3], 1

</llo_original>
